<compile_context>
chip_gen: v5e
topology: v5e:2x2
jax: 0.10.0
libtpu: 0.0.40
codegen_flags: <defaults>
</compile_context>

<pallas_src>
import functools

import jax
import jax.numpy as jnp
from jax import lax
from jax.experimental import pallas as pl
from jax.experimental.pallas import tpu as pltpu


def _wce_kernel(logits_ref, target_ref, loss_ref, m_ref, l_ref, sel_ref,
                *, c_tile, num_classes, mask_tail):
    """Grid = (row_tiles, class_tiles); the class (lane) axis is the reduction axis."""
    k = pl.program_id(1)

    @pl.when(k == 0)
    def _():
        m_ref[...] = jnp.full(m_ref.shape, -jnp.inf, jnp.float32)
        l_ref[...] = jnp.zeros(l_ref.shape, jnp.float32)
        sel_ref[...] = jnp.zeros(sel_ref.shape, jnp.float32)

    x = logits_ref[...].astype(jnp.float32)                        # (TB, TC)
    base = k * c_tile                                               # class offset of tile
    lane = lax.broadcasted_iota(jnp.int32, (1, c_tile), 1)          # (1, TC) lane ids

    if mask_tail:
        # Ragged tail class tile: lanes past `num_classes` were never DMA'd and hold
        # garbage -> push them far below any real logit before max / exp-sum.
        x = jnp.where(lane < (num_classes - base), x, -1e30)

    # ---- online logsumexp over the class (lane) axis ----
    m_prev = m_ref[...]                                             # (TB, 1)
    m_new = jnp.maximum(m_prev, jnp.max(x, axis=1, keepdims=True))
    alpha = jnp.exp(m_prev - m_new)
    l_ref[...] = alpha * l_ref[...] + jnp.sum(jnp.exp(x - m_new), axis=1, keepdims=True)
    m_ref[...] = m_new

    # ---- accumulate the target-class logit (one-hot never hits masked lanes) ----
    one_hot = lane == (target_ref[...] - base)                      # (TB, TC) bool
    sel_ref[...] += jnp.sum(jnp.where(one_hot, x, 0.0), axis=1, keepdims=True)

    # ---- finalize: per-sample (unweighted) loss for this row tile ----
    @pl.when(k == pl.num_programs(1) - 1)
    def _():
        loss_ref[...] = m_ref[...] + jnp.log(l_ref[...]) - sel_ref[...]   # (TB, 1)


def _round_down8(x):
    return (x // 8) * 8


def _pick_tiles(B, C, b_tile=None, c_tile=None):
    # --- VMEM budget from the actual chip generation (fallback: v7x's 64 MiB) ---
    try:
        vmem_cap = int(pltpu.get_tpu_info().vmem_capacity_bytes)
    except Exception:  # tracing off-TPU / older API: assume the smallest (v7x) VMEM
        vmem_cap = 64 * 1024 * 1024
    vmem_limit = max(32 * 1024 * 1024, min(vmem_cap * 3 // 4, 96 * 1024 * 1024))

    # --- row tile: multiple of 8, never larger than B, and >= 2 blocks when B >= 256
    #     so both v7x TensorCores get work on the "parallel" axis ---
    if b_tile is not None:
        tb = max(8, _round_down8(int(b_tile)))
    elif B >= 256:
        tb = min(256, max(8, _round_down8((B + 1) // 2)))
    else:
        tb = 256
    if tb >= B:
        tb = B if B <= 8 else _round_down8(B)

    # --- class tile: bound the per-step element count so the double-buffered logits
    #     tile plus the f32 elementwise temporaries stay well inside the VMEM limit ---
    elems_cap = vmem_limit // 32                  # ~8 f32 words of headroom per element
    if c_tile is not None:
        tc = max(128, (int(c_tile) // 128) * 128)
    else:
        tc = max(128, min(elems_cap // max(tb, 1), 1 << 16) // 128 * 128)
    if tc >= C:
        tc = C                                    # single full-width class tile

    return tb, tc, int(vmem_limit)


def weighted_cross_entropy_loss(logits, target, weights=None, aggregate="mean",
                                b_tile=None, c_tile=None):
    """Forward of WeightedCrossEntropyLoss (matches the PyTorch module exactly)."""
    assert aggregate in ("sum", "mean", None)
    assert logits.ndim == 2
    B, C = logits.shape
    if target.ndim == 2:
        target = target[:, 0]

    tb, tc, vmem_limit = _pick_tiles(B, C, b_tile=b_tile, c_tile=c_tile)
    nb = pl.cdiv(B, tb)
    nc = pl.cdiv(C, tc)
    mask_tail = (nc > 1) and (C % tc != 0)

    target2d = target.astype(jnp.int32).reshape(B, 1)

    kernel = functools.partial(_wce_kernel, c_tile=tc, num_classes=C,
                               mask_tail=mask_tail)
    loss_col = pl.pallas_call(
        kernel,
        out_shape=jax.ShapeDtypeStruct((B, 1), jnp.float32),       # per-sample loss column
        grid_spec=pltpu.PrefetchScalarGridSpec(
            num_scalar_prefetch=0,
            grid=(nb, nc),                                         # reduction (C) axis last
            in_specs=[
                pl.BlockSpec((tb, tc), lambda i, k: (i, k)),       # logits, native dtype
                pl.BlockSpec((tb, 1), lambda i, k: (i, 0)),        # target ids
            ],
            out_specs=pl.BlockSpec((tb, 1), lambda i, k: (i, 0)),  # resident across C axis
            scratch_shapes=[
                pltpu.VMEM((tb, 1), jnp.float32),                  # running max m
                pltpu.VMEM((tb, 1), jnp.float32),                  # running sum l
                pltpu.VMEM((tb, 1), jnp.float32),                  # running selected logit
            ],
        ),
        compiler_params=pltpu.CompilerParams(
            dimension_semantics=("parallel", "arbitrary"),
            vmem_limit_bytes=vmem_limit,
        ),
    )(logits, target2d)

    loss_vec = loss_col[:, 0]
    if weights is not None:
        loss_vec = loss_vec * weights.astype(jnp.float32)
    # NOTE: the reference module's 'mean' is a plain mean over the batch of the
    # (already weighted) per-sample losses -- it does NOT divide by sum(weights).
    if aggregate == "mean":
        return jnp.mean(loss_vec)
    if aggregate == "sum":
        return jnp.sum(loss_vec)
    return loss_vec


def _reference(logits, target, weights, aggregate):
    x = logits.astype(jnp.float32)
    lse = jax.scipy.special.logsumexp(x, axis=1)
    sel = jnp.take_along_axis(x, target[:, None].astype(jnp.int32), axis=1)[:, 0]
    loss = lse - sel
    if weights is not None:
        loss = loss * weights.astype(jnp.float32)
    if aggregate == "mean":
        return jnp.mean(loss)
    if aggregate == "sum":
        return jnp.sum(loss)
    return loss


if __name__ == "__main__":
    key = jax.random.PRNGKey(0)

    # --- case 1: tiny, single full-width tile, f32, all aggregates ---
    k1, k2, k3 = jax.random.split(key, 3)
    B, C = 8, 32
    logits = jax.random.normal(k1, (B, C), dtype=jnp.float32)
    target = jax.random.randint(k2, (B,), 0, C, dtype=jnp.int32)
    weights = jax.random.uniform(k3, (B,), dtype=jnp.float32) + 0.5

    out_mean = weighted_cross_entropy_loss(logits, target, weights, aggregate="mean")
    out_sum = weighted_cross_entropy_loss(logits, target, weights, aggregate="sum")
    out_vec = weighted_cross_entropy_loss(logits, target, weights, aggregate=None)
    jax.block_until_ready((out_mean, out_sum, out_vec))
    assert jnp.allclose(out_mean, _reference(logits, target, weights, "mean"), atol=1e-4, rtol=1e-4)
    assert jnp.allclose(out_sum, _reference(logits, target, weights, "sum"), atol=1e-4, rtol=1e-4)
    assert jnp.allclose(out_vec, _reference(logits, target, weights, None), atol=1e-4, rtol=1e-4)

    # --- case 2: multi-tile grid, ragged on both axes (no padding anywhere), f32 ---
    k4, k5, k6 = jax.random.split(k1, 3)
    B2, C2 = 250, 300
    logits2 = 3.0 * jax.random.normal(k4, (B2, C2), dtype=jnp.float32)
    target2 = jax.random.randint(k5, (B2,), 0, C2, dtype=jnp.int32)
    weights2 = jax.random.uniform(k6, (B2,), dtype=jnp.float32)
    out2 = weighted_cross_entropy_loss(logits2, target2, weights2, aggregate=None,
                                       b_tile=128, c_tile=128)   # forces ragged tail mask
    jax.block_until_ready(out2)
    assert jnp.allclose(out2, _reference(logits2, target2, weights2, None), atol=1e-4, rtol=1e-4)
    out2m = weighted_cross_entropy_loss(logits2, target2, weights2, aggregate="mean",
                                        b_tile=128, c_tile=128)
    assert jnp.allclose(out2m, _reference(logits2, target2, weights2, "mean"), atol=1e-4, rtol=1e-4)
    # same shapes through the auto (get_tpu_info-derived) tiling path
    out2d = weighted_cross_entropy_loss(logits2, target2, weights2, aggregate=None)
    jax.block_until_ready(out2d)
    assert jnp.allclose(out2d, _reference(logits2, target2, weights2, None), atol=1e-4, rtol=1e-4)

    # --- case 3: bf16 logits straight into the kernel (per-tile f32 cast) ---
    logits3 = logits2[:64, :200].astype(jnp.bfloat16)
    target3 = target2[:64] % 200
    out3 = weighted_cross_entropy_loss(logits3, target3, None, aggregate="sum",
                                       b_tile=128, c_tile=128)
    jax.block_until_ready(out3)
    assert jnp.allclose(out3, _reference(logits3, target3, None, "sum"), atol=1e-2, rtol=1e-3)

    print("KERNEL_OK")
</pallas_src>

<mosaic_0001>
module attributes {stable_mosaic.version = 11 : i64} {
  func.func @_wce_kernel(%arg0: i32, %arg1: i32, %arg2: memref<8x32xf32, #tpu.memory_space<vmem>>, %arg3: memref<8x1xi32, #tpu.memory_space<vmem>>, %arg4: memref<8x1xf32, #tpu.memory_space<vmem>>, %arg5: memref<8x1xf32, #tpu.memory_space<vmem>>, %arg6: memref<8x1xf32, #tpu.memory_space<vmem>>, %arg7: memref<8x1xf32, #tpu.memory_space<vmem>>) attributes {dimension_semantics = [#tpu.dimension_semantics<parallel>, #tpu.dimension_semantics<arbitrary>], iteration_bounds = array<i64: 1, 1>, scalar_prefetch = 0 : i64, scratch_operands = 3 : i64, tpu.core_type = #tpu.core_type<tc>, window_params = [{transform_indices = @transform_0, window_bounds = array<i64: 8, 32>}, {transform_indices = @transform_1, window_bounds = array<i64: 8, 1>}, {transform_indices = @transform_2, window_bounds = array<i64: 8, 1>}]} {
    %c0_i32 = arith.constant 0 : i32
    %0 = arith.cmpi eq, %arg1, %c0_i32 : i32
    %1 = arith.extui %0 : i1 to i32
    %c0_i32_0 = arith.constant 0 : i32
    %2 = arith.cmpi ne, %1, %c0_i32_0 : i32
    scf.if %2 {
      %cst_21 = arith.constant 0xFF800000 : f32
      %38 = vector.broadcast %cst_21 : f32 to vector<8x1xf32>
      %c0_22 = arith.constant 0 : index
      %c0_23 = arith.constant 0 : index
      %39 = vector.load %arg5[%c0_22, %c0_23] : memref<8x1xf32, #tpu.memory_space<vmem>>, vector<8x1xf32>
      tpu.vector_store %arg5[%c0_22, %c0_23], %38 {strides = array<i32>} : memref<8x1xf32, #tpu.memory_space<vmem>>, vector<8x1xf32>,
      %cst_24 = arith.constant 0.000000e+00 : f32
      %40 = vector.broadcast %cst_24 : f32 to vector<8x1xf32>
      %c0_25 = arith.constant 0 : index
      %c0_26 = arith.constant 0 : index
      %41 = vector.load %arg6[%c0_25, %c0_26] : memref<8x1xf32, #tpu.memory_space<vmem>>, vector<8x1xf32>
      tpu.vector_store %arg6[%c0_25, %c0_26], %40 {strides = array<i32>} : memref<8x1xf32, #tpu.memory_space<vmem>>, vector<8x1xf32>,
      %cst_27 = arith.constant 0.000000e+00 : f32
      %42 = vector.broadcast %cst_27 : f32 to vector<8x1xf32>
      %c0_28 = arith.constant 0 : index
      %c0_29 = arith.constant 0 : index
      %43 = vector.load %arg7[%c0_28, %c0_29] : memref<8x1xf32, #tpu.memory_space<vmem>>, vector<8x1xf32>
      tpu.vector_store %arg7[%c0_28, %c0_29], %42 {strides = array<i32>} : memref<8x1xf32, #tpu.memory_space<vmem>>, vector<8x1xf32>,
    } else {
    }
    %c0 = arith.constant 0 : index
    %c0_1 = arith.constant 0 : index
    %3 = vector.load %arg2[%c0, %c0_1] : memref<8x32xf32, #tpu.memory_space<vmem>>, vector<8x32xf32>
    %c32_i32 = arith.constant 32 : i32
    %4 = arith.muli %arg1, %c32_i32 : i32
    %5 = tpu.iota {dimensions = array<i32: 1>} : vector<1x32xi32>
    %c0_2 = arith.constant 0 : index
    %c0_3 = arith.constant 0 : index
    %6 = vector.load %arg5[%c0_2, %c0_3] : memref<8x1xf32, #tpu.memory_space<vmem>>, vector<8x1xf32>
    %cst = arith.constant dense<0xFF800000> : vector<8xf32>
    %7 = vector.multi_reduction <maximumf>, %3, %cst [1] : vector<8x32xf32> to vector<8xf32>
    %8 = vector.shape_cast %7 : vector<8xf32> to vector<8x1xf32>
    %9 = arith.maximumf %6, %8 : vector<8x1xf32>
    %10 = arith.subf %6, %9 : vector<8x1xf32>
    %11 = math.exp %10 : vector<8x1xf32>
    %c0_4 = arith.constant 0 : index
    %c0_5 = arith.constant 0 : index
    %12 = vector.load %arg6[%c0_4, %c0_5] : memref<8x1xf32, #tpu.memory_space<vmem>>, vector<8x1xf32>
    %13 = arith.mulf %11, %12 : vector<8x1xf32>
    %14 = vector.broadcast %9 : vector<8x1xf32> to vector<8x32xf32>
    %15 = arith.subf %3, %14 : vector<8x32xf32>
    %16 = math.exp %15 : vector<8x32xf32>
    %cst_6 = arith.constant dense<0.000000e+00> : vector<8xf32>
    %17 = vector.multi_reduction <add>, %16, %cst_6 [1] : vector<8x32xf32> to vector<8xf32>
    %18 = vector.shape_cast %17 : vector<8xf32> to vector<8x1xf32>
    %19 = arith.addf %13, %18 : vector<8x1xf32>
    %c0_7 = arith.constant 0 : index
    %c0_8 = arith.constant 0 : index
    %20 = vector.load %arg6[%c0_7, %c0_8] : memref<8x1xf32, #tpu.memory_space<vmem>>, vector<8x1xf32>
    tpu.vector_store %arg6[%c0_7, %c0_8], %19 {strides = array<i32>} : memref<8x1xf32, #tpu.memory_space<vmem>>, vector<8x1xf32>,
    %c0_9 = arith.constant 0 : index
    %c0_10 = arith.constant 0 : index
    %21 = vector.load %arg5[%c0_9, %c0_10] : memref<8x1xf32, #tpu.memory_space<vmem>>, vector<8x1xf32>
    tpu.vector_store %arg5[%c0_9, %c0_10], %9 {strides = array<i32>} : memref<8x1xf32, #tpu.memory_space<vmem>>, vector<8x1xf32>,
    %c0_11 = arith.constant 0 : index
    %c0_12 = arith.constant 0 : index
    %22 = vector.load %arg3[%c0_11, %c0_12] : memref<8x1xi32, #tpu.memory_space<vmem>>, vector<8x1xi32>
    %23 = vector.broadcast %4 : i32 to vector<8x1xi32>
    %24 = arith.subi %22, %23 : vector<8x1xi32>
    %25 = vector.broadcast %5 : vector<1x32xi32> to vector<8x32xi32>
    %26 = vector.broadcast %24 : vector<8x1xi32> to vector<8x32xi32>
    %27 = arith.cmpi eq, %25, %26 : vector<8x32xi32>
    %c0_13 = arith.constant 0 : index
    %c0_14 = arith.constant 0 : index
    %28 = vector.load %arg7[%c0_13, %c0_14] : memref<8x1xf32, #tpu.memory_space<vmem>>, vector<8x1xf32>
    %cst_15 = arith.constant 0.000000e+00 : f32
    %29 = vector.broadcast %cst_15 : f32 to vector<8x32xf32>
    %30 = arith.select %27, %3, %29 : vector<8x32xi1>, vector<8x32xf32>
    %cst_16 = arith.constant dense<0.000000e+00> : vector<8xf32>
    %31 = vector.multi_reduction <add>, %30, %cst_16 [1] : vector<8x32xf32> to vector<8xf32>
    %32 = vector.shape_cast %31 : vector<8xf32> to vector<8x1xf32>
    %33 = arith.addf %28, %32 : vector<8x1xf32>
    %c0_17 = arith.constant 0 : index
    %c0_18 = arith.constant 0 : index
    %34 = vector.load %arg7[%c0_17, %c0_18] : memref<8x1xf32, #tpu.memory_space<vmem>>, vector<8x1xf32>
    tpu.vector_store %arg7[%c0_17, %c0_18], %33 {strides = array<i32>} : memref<8x1xf32, #tpu.memory_space<vmem>>, vector<8x1xf32>,
    %c0_i32_19 = arith.constant 0 : i32
    %35 = arith.cmpi eq, %arg1, %c0_i32_19 : i32
    %36 = arith.extui %35 : i1 to i32
    %c0_i32_20 = arith.constant 0 : i32
    %37 = arith.cmpi ne, %36, %c0_i32_20 : i32
    scf.if %37 {
      %c0_21 = arith.constant 0 : index
      %c0_22 = arith.constant 0 : index
      %38 = vector.load %arg5[%c0_21, %c0_22] : memref<8x1xf32, #tpu.memory_space<vmem>>, vector<8x1xf32>
      %c0_23 = arith.constant 0 : index
      %c0_24 = arith.constant 0 : index
      %39 = vector.load %arg6[%c0_23, %c0_24] : memref<8x1xf32, #tpu.memory_space<vmem>>, vector<8x1xf32>
      %40 = math.log %39 : vector<8x1xf32>
      %41 = arith.addf %38, %40 : vector<8x1xf32>
      %c0_25 = arith.constant 0 : index
      %c0_26 = arith.constant 0 : index
      %42 = vector.load %arg7[%c0_25, %c0_26] : memref<8x1xf32, #tpu.memory_space<vmem>>, vector<8x1xf32>
      %43 = arith.subf %41, %42 : vector<8x1xf32>
      %c0_27 = arith.constant 0 : index
      %c0_28 = arith.constant 0 : index
      %44 = vector.load %arg4[%c0_27, %c0_28] : memref<8x1xf32, #tpu.memory_space<vmem>>, vector<8x1xf32>
      tpu.vector_store %arg4[%c0_27, %c0_28], %43 {strides = array<i32>} : memref<8x1xf32, #tpu.memory_space<vmem>>, vector<8x1xf32>,
    } else {
    }
    return
  }
  func.func @transform_0(%arg0: i32, %arg1: i32) -> (i32, i32) {
    %c0_i32 = arith.constant 0 : i32
    return %arg0, %arg1 : i32, i32
  }
  func.func @transform_1(%arg0: i32, %arg1: i32) -> (i32, i32) {
    %c0_i32 = arith.constant 0 : i32
    %c0_i32_0 = arith.constant 0 : i32
    return %arg0, %c0_i32 : i32, i32
  }
  func.func @transform_2(%arg0: i32, %arg1: i32) -> (i32, i32) {
    %c0_i32 = arith.constant 0 : i32
    %c0_i32_0 = arith.constant 0 : i32
    return %arg0, %c0_i32 : i32, i32
  }
}

</mosaic_0001>

<llo_original>
// kernel: tpu_custom_call.1
$region0: #{tpu_custom_call.1}
  #allocation0 [shape = 'u32[]', space=smem, size = 0x4, offset = 0x4, fixed_abs, tag = 'smem constant byte address 0x4 - core index']
  #allocation1 [shape = 'u32[72,128]{1,0:T(1,128)}', space=vmem, size = 0x9000, scoped, tag = 'internal scratch']
  #allocation2 [shape = 'f32[8,1]{1,0:T(8,128)}', space=vmem, size = 0x1000, scoped, tag = 'scratch operand']
  #allocation3 [shape = 'f32[8,1]{1,0:T(8,128)}', space=vmem, size = 0x1000, scoped, tag = 'scratch operand']
  #allocation4 [shape = 'f32[8,1]{1,0:T(8,128)}', space=vmem, size = 0x1000, scoped, tag = 'scratch operand']
  %s0 = inlined_call_operand.vmem [shape: f32[8,32], index: 0, kind: input, shape index: {}]
  %s1 = inlined_call_operand.vmem [shape: s32[8,1], index: 1, kind: input, shape index: {}]
  %s2 = inlined_call_operand.vmem [shape: f32[8,1], index: 2, kind: output, shape index: {}]
  %s3 = sld [smem:[#allocation0]]
  $region26: #{tpu_custom_call.1} parent=0
    _
  %s5 = ssub.s32 1, %s3
  %s6 = scalar_select 0, %s5, %s3
  // Predicated region
  $region2: #{tpu_custom_call.1} parent=0 // pred_check
    _
  $region3: #{tpu_custom_call.1} parent=0 // pred_check_branch
    %8 = sbr.rel (0) target = $region5
  $region4: #{tpu_custom_call.1} parent=0 // pred_region
    _
  $region5: #{tpu_custom_call.1} parent=0 // pred_fallthru
    _
  // Predicated region
  $region6: #{tpu_custom_call.1} parent=0 // pred_check
    _
  $region7: #{tpu_custom_call.1} parent=0 // pred_check_branch
    %10 = sbr.rel (0) target = $region9
  $region8: #{tpu_custom_call.1} parent=0 // pred_region
    _
  $region9: #{tpu_custom_call.1} parent=0 // pred_fallthru
    _
  %p11 = scmp.eq.s32.totalorder 0, 0
  // Predicated region
  $region10: #{tpu_custom_call.1} parent=0 // pred_check
    %p12 = pneg %p11
  $region11: #{tpu_custom_call.1} parent=0 // pred_check_branch
    %14 = sbr.rel (%p12) target = $region13
  $region12: #{tpu_custom_call.1} parent=0 // pred_region
    %vm15 = vcmask 7168
    %16 = vst.msk [vmem:[#allocation2] sm:$0xff] %vm15, -inf
    %17 = vst.msk [vmem:[#allocation3] sm:$0xff] %vm15, 0.0
    %18 = vst.msk [vmem:[#allocation4] sm:$0xff] %vm15, 0.0
  $region13: #{tpu_custom_call.1} parent=0 // pred_fallthru
    _
  %v19 = vld [vmem:[%s0] sm:$0xff]
  %s20 = smul.u32 0, 32
  %v21 = vlaneseq
  %v22 = vand.u32 %v21, 127
  %v23 = vld [vmem:[#allocation2] sm:$0xff]
  %vm24 = vcmask 261120
  %v25 = vsel %vm24, %v19, -inf
  %26 = vmax.xlane.f32.xlu0 %v25
  %v27 = vpop.xlane.xlu0 %26
  %v28 = vmax.f32 %v23, %v27
  %v29 = vsub.f32 %v23, %v28
  %v30 = vmul.f32 %v29, 1.442695
  %v31 = vpow.pop %v30
  %v32 = vld [vmem:[#allocation3] sm:$0xff]
  %v33 = vmul.f32 %v31, %v32
  %35 = vset.pattern.permute.xlu0 0
  %36 = vperm.xlu0 %35, %v28
  %v37 = vpop.permute.xlu0 %36
  %v39 = vsub.f32 %v19, %v37
  %v40 = vmul.f32 %v39, 1.442695
  %v41 = vpow.pop %v40
  %v42 = vsel %vm24, %v41, 0.0
  %43 = vadd.xlane.f32.xlu0 %v42
  %v44 = vpop.xlane.xlu0 %43
  %v45 = vadd.f32 %v33, %v44
  %vm46 = vcmask 7168
  %47 = vst.msk [vmem:[#allocation3] sm:$0xff] %vm46, %v45
  %48 = vst.msk [vmem:[#allocation2] sm:$0xff] %vm46, %v28
  %v49 = vld [vmem:[%s1] sm:$0xff]
  %v50 = vstv %s20
  %v51 = vsub.s32 %v49, %v50
  %52 = vset.pattern.permute.xlu0 0
  %53 = vperm.xlu0 %52, %v51
  %v54 = vpop.permute.xlu0 %53
  %vm55 = vcmp.eq.s32.totalorder %v22, %v54
  %v56 = vld [vmem:[#allocation4] sm:$0xff]
  %v57 = vsel %vm55, %v19, 0.0
  %v58 = vsel %vm24, %v57, 0.0
  %59 = vadd.xlane.f32.xlu0 %v58
  %v60 = vpop.xlane.xlu0 %59
  %v61 = vadd.f32 %v56, %v60
  %62 = vst.msk [vmem:[#allocation4] sm:$0xff] %vm46, %v61
  // Predicated region
  $region14: #{tpu_custom_call.1} parent=0 // pred_check
    %p63 = pneg %p11
  $region15: #{tpu_custom_call.1} parent=0 // pred_check_branch
    %65 = sbr.rel (%p63) target = $region17
  $region16: #{tpu_custom_call.1} parent=0 // pred_region
    %v66 = vld [vmem:[#allocation2] sm:$0xff]
    %v67 = vld [vmem:[#allocation3] sm:$0xff]
    %v68 = vlog2.pop %v67
    %v69 = vmul.f32 %v68, 0.6931472
    %v70 = vadd.f32 %v66, %v69
    %v71 = vld [vmem:[#allocation4] sm:$0xff]
    %v72 = vsub.f32 %v70, %v71
    %73 = vst.msk [vmem:[%s2] sm:$0xff] %vm46, %v72
  $region17: #{tpu_custom_call.1} parent=0 // pred_fallthru
    _
  // Predicated region
  $region18: #{tpu_custom_call.1} parent=0 // pred_check
    _
  $region19: #{tpu_custom_call.1} parent=0 // pred_check_branch
    %75 = sbr.rel (0) target = $region21
  $region20: #{tpu_custom_call.1} parent=0 // pred_region
    _
  $region21: #{tpu_custom_call.1} parent=0 // pred_fallthru
    _
  // Predicated region
  $region22: #{tpu_custom_call.1} parent=0 // pred_check
    _
  $region23: #{tpu_custom_call.1} parent=0 // pred_check_branch
    %77 = sbr.rel (0) target = $region25
  $region24: #{tpu_custom_call.1} parent=0 // pred_region
    _
  $region25: #{tpu_custom_call.1} parent=0 // pred_fallthru
    _

</llo_original>
